<compile_context>
chip_gen: v5e
topology: v5e:2x2
jax: 0.10.0
libtpu: 0.0.40
codegen_flags: <defaults>
</compile_context>

<pallas_src>
import jax
import jax.numpy as jnp
import numpy as np
from jax.experimental import pallas as pl
from jax.experimental.pallas import tpu as pltpu


# ----------------------------- Pallas kernel ------------------------------ #
def critic_kernel(x_ref, a_ref,
                  w1_ref, b1_ref,
                  w2h_ref, w2a_ref, b2_ref,
                  w3_ref, b3_ref,
                  out_ref):
    # fc1 + ReLU:  (TB, n_states) @ (n_states, H1) -> (TB, H1)
    h1 = jnp.dot(x_ref[...], w1_ref[...],
                 preferred_element_type=jnp.float32) + b1_ref[...]
    h1 = jnp.maximum(h1, 0.0)

    # fc2 on cat([h1, a], 1) == h1 @ W2h + sum_k a[:, k] * W2a[k, :]  (exact).
    #  - big H1 x H2 contraction on the MXU with f32 accumulation
    #  - rank-n_actions action term stays on the VPU (no tiny-K MXU matmul)
    h2 = jnp.dot(h1, w2h_ref[...], preferred_element_type=jnp.float32)
    act = b2_ref[...]
    n_actions = a_ref.shape[1]
    for k in range(n_actions):                      # static, tiny (1 for Pendulum)
        act = act + a_ref[:, k:k + 1] * w2a_ref[k:k + 1, :]
    h2 = jnp.maximum(h2 + act, 0.0)

    # fc3: N=1 matmul replaced by VPU multiply + XLU lane reduce.
    # w3_ref is the (1, H2) row of fc3's weight.
    out_ref[...] = (jnp.sum(h2 * w3_ref[...], axis=-1, keepdims=True)
                    + b3_ref[...])


# ------------------------------- wrapper ----------------------------------- #
def critic_forward(x, a, params, *, batch_tile=128):
    """Critic forward pass, tiled over the batch, weights resident in VMEM."""
    (w1, b1, w2h, w2a, b2, w3_row, b3) = params
    B, n_states = x.shape
    n_actions = a.shape[1]

    # Pad batch to a multiple of the tile (keeps MXU M and sublanes full).
    Bp = pl.cdiv(B, batch_tile) * batch_tile
    if Bp != B:
        x = jnp.pad(x, ((0, Bp - B), (0, 0)))
        a = jnp.pad(a, ((0, Bp - B), (0, 0)))
    grid = (Bp // batch_tile,)

    # Weights/biases: same block every grid step -> DMA'd once, VMEM-resident.
    resident = lambda arr: pl.BlockSpec(arr.shape, lambda i: (0, 0))

    out = pl.pallas_call(
        critic_kernel,
        out_shape=jax.ShapeDtypeStruct((Bp, 1), jnp.float32),
        grid=grid,
        in_specs=[
            pl.BlockSpec((batch_tile, n_states), lambda i: (i, 0)),
            pl.BlockSpec((batch_tile, n_actions), lambda i: (i, 0)),
            resident(w1), resident(b1),
            resident(w2h), resident(w2a), resident(b2),
            resident(w3_row), resident(b3),
        ],
        out_specs=pl.BlockSpec((batch_tile, 1), lambda i: (i, 0)),
        compiler_params=pltpu.CompilerParams(
            dimension_semantics=("parallel",)),   # 2x on v7x's two TCs
    )(x, a, w1, b1, w2h, w2a, b2, w3_row, b3)
    return out[:B]


# ------------------------- deterministic param init ----------------------- #
def xavier_uniform(key, fan_in, fan_out):
    limit = np.sqrt(6.0 / (fan_in + fan_out))
    # stored as (in, out) so forward is x @ W
    return jax.random.uniform(key, (fan_in, fan_out), jnp.float32, -limit, limit)


def linear_bias(key, fan_in, fan_out):
    # PyTorch nn.Linear default bias init: U(-1/sqrt(fan_in), 1/sqrt(fan_in))
    bound = 1.0 / np.sqrt(fan_in)
    return jax.random.uniform(key, (1, fan_out), jnp.float32, -bound, bound)


def init_critic_params(key, n_states, n_actions, hidden1, hidden2):
    ks = jax.random.split(key, 6)
    w1 = xavier_uniform(ks[0], n_states, hidden1)
    b1 = linear_bias(ks[1], n_states, hidden1)
    w2 = xavier_uniform(ks[2], hidden1 + n_actions, hidden2)
    b2 = linear_bias(ks[3], hidden1 + n_actions, hidden2)
    w3 = xavier_uniform(ks[4], hidden2, 1)
    b3 = linear_bias(ks[5], hidden2, 1)
    # Split fc2 weight into the h1-part and the action-part (concat rewrite).
    w2h = w2[:hidden1, :]          # (H1, H2)  dominant weight, stays f32
    w2a = w2[hidden1:, :]          # (n_actions, H2)
    w3_row = w3.T                  # (1, H2) row for the fc3 lane reduction
    return (w1, b1, w2h, w2a, b2, w3_row, b3)


# ------------------------------ reference --------------------------------- #
def critic_reference(x, a, params):
    """Pure-JAX reference that matches the PyTorch module exactly (f32)."""
    (w1, b1, w2h, w2a, b2, w3_row, b3) = params
    hi = jax.lax.Precision.HIGHEST
    h1 = jnp.maximum(jnp.dot(x, w1, precision=hi) + b1, 0.0)
    cat = jnp.concatenate([h1, a], axis=1)
    w2 = jnp.concatenate([w2h, w2a], axis=0)
    h2 = jnp.maximum(jnp.dot(cat, w2, precision=hi) + b2, 0.0)
    return jnp.dot(h2, w3_row.T, precision=hi) + b3


# --------------------------------- main ------------------------------------ #
if __name__ == "__main__":
    # Pendulum-v1: observation dim 3, action dim 1; module default hidden 256.
    # Batch of 256 -> grid of two 128-row tiles, exercising the batch grid.
    B, n_states, n_actions = 256, 3, 1
    hidden1 = hidden2 = 256

    key = jax.random.PRNGKey(0)
    k_params, k_x, k_a = jax.random.split(key, 3)

    params = init_critic_params(k_params, n_states, n_actions, hidden1, hidden2)
    x = jax.random.normal(k_x, (B, n_states), jnp.float32)
    a = jax.random.uniform(k_a, (B, n_actions), jnp.float32, -2.0, 2.0)

    out = critic_forward(x, a, params, batch_tile=128)
    out = jax.block_until_ready(out)

    ref = critic_reference(x, a, params)
    assert out.shape == (B, 1), out.shape
    np.testing.assert_allclose(np.asarray(out), np.asarray(ref),
                               rtol=1e-3, atol=1e-3)
    print("KERNEL_OK")
</pallas_src>

<mosaic_0001>
module attributes {stable_mosaic.version = 11 : i64} {
  func.func @critic_kernel(%arg0: i32, %arg1: memref<128x3xf32, #tpu.memory_space<vmem>>, %arg2: memref<128x1xf32, #tpu.memory_space<vmem>>, %arg3: memref<3x256xf32, #tpu.memory_space<vmem>>, %arg4: memref<1x256xf32, #tpu.memory_space<vmem>>, %arg5: memref<256x256xf32, #tpu.memory_space<vmem>>, %arg6: memref<1x256xf32, #tpu.memory_space<vmem>>, %arg7: memref<1x256xf32, #tpu.memory_space<vmem>>, %arg8: memref<1x256xf32, #tpu.memory_space<vmem>>, %arg9: memref<1x1xf32, #tpu.memory_space<vmem>>, %arg10: memref<128x1xf32, #tpu.memory_space<vmem>>) attributes {dimension_semantics = [#tpu.dimension_semantics<parallel>], iteration_bounds = array<i64: 2>, scalar_prefetch = 0 : i64, scratch_operands = 0 : i64, tpu.core_type = #tpu.core_type<tc>, window_params = [{transform_indices = @transform_0, window_bounds = array<i64: 128, 3>}, {transform_indices = @transform_1, window_bounds = array<i64: 128, 1>}, {pipeline_mode = #tpu.pipeline_mode<synchronous>, transform_indices = @transform_2, window_bounds = array<i64: 3, 256>}, {pipeline_mode = #tpu.pipeline_mode<synchronous>, transform_indices = @transform_3, window_bounds = array<i64: 1, 256>}, {pipeline_mode = #tpu.pipeline_mode<synchronous>, transform_indices = @transform_4, window_bounds = array<i64: 256, 256>}, {pipeline_mode = #tpu.pipeline_mode<synchronous>, transform_indices = @transform_5, window_bounds = array<i64: 1, 256>}, {pipeline_mode = #tpu.pipeline_mode<synchronous>, transform_indices = @transform_6, window_bounds = array<i64: 1, 256>}, {pipeline_mode = #tpu.pipeline_mode<synchronous>, transform_indices = @transform_7, window_bounds = array<i64: 1, 256>}, {pipeline_mode = #tpu.pipeline_mode<synchronous>, transform_indices = @transform_8, window_bounds = array<i64: 1, 1>}, {transform_indices = @transform_9, window_bounds = array<i64: 128, 1>}]} {
    %c0 = arith.constant 0 : index
    %c0_0 = arith.constant 0 : index
    %0 = vector.load %arg1[%c0, %c0_0] : memref<128x3xf32, #tpu.memory_space<vmem>>, vector<128x3xf32>
    %c0_1 = arith.constant 0 : index
    %c0_2 = arith.constant 0 : index
    %1 = vector.load %arg3[%c0_1, %c0_2] : memref<3x256xf32, #tpu.memory_space<vmem>>, vector<3x256xf32>
    %cst = arith.constant dense<0.000000e+00> : vector<128x256xf32>
    %2 = tpu.matmul %0, %1, %cst {dimension_numbers = #tpu.dot_dimension_numbers<[1], [0], [0], [1], [0, 0, 1, 1], [], []>} : vector<128x3xf32>, vector<3x256xf32>, vector<128x256xf32> -> vector<128x256xf32>
    %c0_3 = arith.constant 0 : index
    %c0_4 = arith.constant 0 : index
    %3 = vector.load %arg4[%c0_3, %c0_4] : memref<1x256xf32, #tpu.memory_space<vmem>>, vector<1x256xf32>
    %4 = vector.broadcast %3 : vector<1x256xf32> to vector<128x256xf32>
    %5 = arith.addf %2, %4 : vector<128x256xf32>
    %cst_5 = arith.constant 0.000000e+00 : f32
    %6 = vector.broadcast %cst_5 : f32 to vector<128x256xf32>
    %7 = arith.maximumf %5, %6 : vector<128x256xf32>
    %c0_6 = arith.constant 0 : index
    %c0_7 = arith.constant 0 : index
    %8 = vector.load %arg5[%c0_6, %c0_7] : memref<256x256xf32, #tpu.memory_space<vmem>>, vector<256x256xf32>
    %cst_8 = arith.constant dense<0.000000e+00> : vector<128x256xf32>
    %9 = tpu.matmul %7, %8, %cst_8 {dimension_numbers = #tpu.dot_dimension_numbers<[1], [0], [0], [1], [0, 0, 1, 1], [], []>} : vector<128x256xf32>, vector<256x256xf32>, vector<128x256xf32> -> vector<128x256xf32>
    %c0_9 = arith.constant 0 : index
    %c0_10 = arith.constant 0 : index
    %10 = vector.load %arg7[%c0_9, %c0_10] : memref<1x256xf32, #tpu.memory_space<vmem>>, vector<1x256xf32>
    %c0_11 = arith.constant 0 : index
    %c0_12 = arith.constant 0 : index
    %11 = vector.load %arg2[%c0_11, %c0_12] : memref<128x1xf32, #tpu.memory_space<vmem>>, vector<128x1xf32>
    %c0_13 = arith.constant 0 : index
    %c0_14 = arith.constant 0 : index
    %12 = vector.load %arg6[%c0_13, %c0_14] : memref<1x256xf32, #tpu.memory_space<vmem>>, vector<1x256xf32>
    %13 = vector.broadcast %11 : vector<128x1xf32> to vector<128x256xf32>
    %14 = vector.broadcast %12 : vector<1x256xf32> to vector<128x256xf32>
    %15 = arith.mulf %13, %14 : vector<128x256xf32>
    %16 = vector.broadcast %10 : vector<1x256xf32> to vector<128x256xf32>
    %17 = arith.addf %16, %15 : vector<128x256xf32>
    %18 = arith.addf %9, %17 : vector<128x256xf32>
    %cst_15 = arith.constant 0.000000e+00 : f32
    %19 = vector.broadcast %cst_15 : f32 to vector<128x256xf32>
    %20 = arith.maximumf %18, %19 : vector<128x256xf32>
    %c0_16 = arith.constant 0 : index
    %c0_17 = arith.constant 0 : index
    %21 = vector.load %arg8[%c0_16, %c0_17] : memref<1x256xf32, #tpu.memory_space<vmem>>, vector<1x256xf32>
    %22 = vector.broadcast %21 : vector<1x256xf32> to vector<128x256xf32>
    %23 = arith.mulf %20, %22 : vector<128x256xf32>
    %cst_18 = arith.constant dense<0.000000e+00> : vector<128xf32>
    %24 = vector.multi_reduction <add>, %23, %cst_18 [1] : vector<128x256xf32> to vector<128xf32>
    %25 = vector.shape_cast %24 : vector<128xf32> to vector<128x1xf32>
    %c0_19 = arith.constant 0 : index
    %c0_20 = arith.constant 0 : index
    %26 = vector.load %arg9[%c0_19, %c0_20] : memref<1x1xf32, #tpu.memory_space<vmem>>, vector<1x1xf32>
    %27 = vector.broadcast %26 : vector<1x1xf32> to vector<128x1xf32>
    %28 = arith.addf %25, %27 : vector<128x1xf32>
    %c0_21 = arith.constant 0 : index
    %c0_22 = arith.constant 0 : index
    %29 = vector.load %arg10[%c0_21, %c0_22] : memref<128x1xf32, #tpu.memory_space<vmem>>, vector<128x1xf32>
    tpu.vector_store %arg10[%c0_21, %c0_22], %28 {strides = array<i32>} : memref<128x1xf32, #tpu.memory_space<vmem>>, vector<128x1xf32>,
    return
  }
  func.func @transform_0(%arg0: i32) -> (i32, i32) {
    %c0_i32 = arith.constant 0 : i32
    %c0_i32_0 = arith.constant 0 : i32
    return %arg0, %c0_i32 : i32, i32
  }
  func.func @transform_1(%arg0: i32) -> (i32, i32) {
    %c0_i32 = arith.constant 0 : i32
    %c0_i32_0 = arith.constant 0 : i32
    return %arg0, %c0_i32 : i32, i32
  }
  func.func @transform_2(%arg0: i32) -> (i32, i32) {
    %c0_i32 = arith.constant 0 : i32
    %c0_i32_0 = arith.constant 0 : i32
    %c0_i32_1 = arith.constant 0 : i32
    return %c0_i32, %c0_i32_0 : i32, i32
  }
  func.func @transform_3(%arg0: i32) -> (i32, i32) {
    %c0_i32 = arith.constant 0 : i32
    %c0_i32_0 = arith.constant 0 : i32
    %c0_i32_1 = arith.constant 0 : i32
    return %c0_i32, %c0_i32_0 : i32, i32
  }
  func.func @transform_4(%arg0: i32) -> (i32, i32) {
    %c0_i32 = arith.constant 0 : i32
    %c0_i32_0 = arith.constant 0 : i32
    %c0_i32_1 = arith.constant 0 : i32
    return %c0_i32, %c0_i32_0 : i32, i32
  }
  func.func @transform_5(%arg0: i32) -> (i32, i32) {
    %c0_i32 = arith.constant 0 : i32
    %c0_i32_0 = arith.constant 0 : i32
    %c0_i32_1 = arith.constant 0 : i32
    return %c0_i32, %c0_i32_0 : i32, i32
  }
  func.func @transform_6(%arg0: i32) -> (i32, i32) {
    %c0_i32 = arith.constant 0 : i32
    %c0_i32_0 = arith.constant 0 : i32
    %c0_i32_1 = arith.constant 0 : i32
    return %c0_i32, %c0_i32_0 : i32, i32
  }
  func.func @transform_7(%arg0: i32) -> (i32, i32) {
    %c0_i32 = arith.constant 0 : i32
    %c0_i32_0 = arith.constant 0 : i32
    %c0_i32_1 = arith.constant 0 : i32
    return %c0_i32, %c0_i32_0 : i32, i32
  }
  func.func @transform_8(%arg0: i32) -> (i32, i32) {
    %c0_i32 = arith.constant 0 : i32
    %c0_i32_0 = arith.constant 0 : i32
    %c0_i32_1 = arith.constant 0 : i32
    return %c0_i32, %c0_i32_0 : i32, i32
  }
  func.func @transform_9(%arg0: i32) -> (i32, i32) {
    %c0_i32 = arith.constant 0 : i32
    %c0_i32_0 = arith.constant 0 : i32
    return %arg0, %c0_i32 : i32, i32
  }
}

</mosaic_0001>

<llo_original>
// kernel: tpu_custom_call.1
$region0: #{tpu_custom_call.1}
  #allocation0 [shape = 'u32[]', space=smem, size = 0x4, offset = 0x4, fixed_abs, tag = 'smem constant byte address 0x4 - core index']
  #allocation1 [shape = 'u32[72,128]{1,0:T(1,128)}', space=vmem, size = 0x9000, scoped, tag = 'internal scratch']
  #allocation2 [shape = 'f32[1,1]{1,0:T(1,128)S(1)}', space=vmem, size = 0x200, scoped, tag = 'scoped memory for tpu_custom_call.1']
  %s0 = inlined_call_operand.vmem [shape: f32[256,3], index: 0, kind: input, shape index: {}]
  %s1 = inlined_call_operand.vmem [shape: f32[256,1], index: 1, kind: input, shape index: {}]
  %s2 = inlined_call_operand.vmem [shape: f32[3,256], index: 2, kind: input, shape index: {}]
  %s3 = inlined_call_operand.hbm [shape: f32[1,256], index: 3, kind: input, shape index: {}]
  %s4 = inlined_call_operand.vmem [shape: f32[256,256], index: 4, kind: input, shape index: {}]
  %s5 = inlined_call_operand.vmem [shape: f32[1,256], index: 5, kind: input, shape index: {}]
  %s6 = inlined_call_operand.vmem [shape: f32[1,256], index: 6, kind: input, shape index: {}]
  %s7 = inlined_call_operand.hbm [shape: f32[1,256], index: 7, kind: input, shape index: {}]
  %s8 = inlined_call_operand.<no memory space> [shape: f32[1,1], index: 8, kind: input, shape index: {}]
  %s9 = inlined_call_operand.vmem [shape: f32[256,1], index: 9, kind: output, shape index: {}]
  %s10 = sld [smem:[#allocation0]]
  $region77: #{tpu_custom_call.1} parent=0
    _
  %s12 = ssub.s32 1, %s10
  %s13 = scalar_select 0, %s12, %s10
  %v14 = vstv %s8
  %15 = vst [vmem:[#allocation2] sm:$0x1] %v14
  $region1: #{tpu_custom_call.1} parent=0
    #allocation3 [shape = 'u8[1024]{0}', space=vmem, size = 0x400, scoped, tag = 'input window, operand 3, single buffered']
    #allocation4 [shape = 's32[2]{0}', space=sflag, size = 0x8, scoped, tag = 'scoped memory for tpu_custom_call.1']
    #allocation5 [shape = 'u8[1024]{0}', space=vmem, size = 0x400, scoped, tag = 'input window, operand 7, single buffered']
    #allocation6 [shape = 's32[1]{0}', space=sflag, size = 0x4, scoped, tag = 'scoped memory for tpu_custom_call.1']
    %16 = vsyncpa [#allocation4], 0
    %17 = vsyncpa [#allocation6], 0
    loop: start=0, step=1, limit=4
    $region2: #{tpu_custom_call.1} parent=1 // loop_pre_header
      _
    $region3: #{tpu_custom_call.1} parent=1 // loop_header
      %s19 = sphi 0, %s23
      %p20 = scmp.ge.s32.totalorder %s19, 4
      %s29 = sphi 0, %s31
      %s32 = sphi 0, %s29
      %s33 = sphi 0, %s32
      %s49 = sphi 0, %s33
      %s55 = sphi 0, %s57
      %s58 = sphi 0, %s55
      %s59 = sphi 0, %s58
      %s75 = sphi 0, %s59
      %s79 = sphi 0, %s79
      %s81 = sphi 0, %s79
      %s82 = sphi 0, %s81
      %s96 = sphi 0, %s82
      %s100 = sphi 0, %s100
      %s102 = sphi 0, %s100
      %s103 = sphi 0, %s102
      %s117 = sphi 0, %s103
      %s121 = sphi 0, %s121
      %s123 = sphi 0, %s121
      %s124 = sphi 0, %s123
      %s138 = sphi 0, %s124
      %s142 = sphi 0, %s142
      %s144 = sphi 0, %s142
      %s145 = sphi 0, %s144
      %s159 = sphi 0, %s145
      %s163 = sphi 0, %s163
      %s165 = sphi 0, %s163
      %s166 = sphi 0, %s165
      %s180 = sphi 0, %s166
      %s184 = sphi 0, %s184
      %s186 = sphi 0, %s184
      %s187 = sphi 0, %s186
      %s201 = sphi 0, %s187
      %s205 = sphi 0, %s205
      %s207 = sphi 0, %s205
      %s208 = sphi 0, %s207
      %s222 = sphi 0, %s208
      %s228 = sphi 0, %s230
      %s231 = sphi 0, %s228
      %s232 = sphi 0, %s231
      %s248 = sphi 0, %s232
    $region4: #{tpu_custom_call.1} parent=1 // loop_header_branch
      %22 = sbr.rel (%p20) target = $region8
    $region5: #{tpu_custom_call.1} parent=1 // loop_body
      %s24 = ssub.s32 %s19, 1
      %s25 = ssub.s32 %s19, 2
      %s26 = sadd.s32 %s19, 1
      %s27 = ssub.s32 %s19, %s26
      %p28 = scmp.eq.s32.totalorder %s27, 0
      %s30 = sadd.s32 %s29, 1
      %s31 = scalar_select %p28, %s29, %s30
      %p34 = pneg %p28
      %p35 = scmp.eq.s32.totalorder %s19, 1
      %p36 = por %p34, %p35
      %p37 = scmp.ne.s32.totalorder %s29, %s32
      %p38 = scmp.eq.s32.totalorder %s19, 0
      %p39 = por %p37, %p38
      %p40 = scmp.ne.s32.totalorder %s29, %s32
      %p41 = scmp.eq.s32.totalorder %s24, 1
      %p42 = por %p40, %p41
      %p43 = scmp.ne.s32.totalorder %s32, %s33
      %p44 = scmp.eq.s32.totalorder %s24, 0
      %p45 = por %p43, %p44
      %p46 = scmp.ne.s32.totalorder %s32, %s33
      %p47 = scmp.eq.s32.totalorder %s25, 1
      %p48 = por %p46, %p47
      %p50 = scmp.ne.s32.totalorder %s33, %s49
      %p51 = scmp.eq.s32.totalorder %s25, 0
      %p52 = por %p50, %p51
      %s53 = ssub.s32 %s19, %s26
      %p54 = scmp.eq.s32.totalorder %s53, 0
      %s56 = sadd.s32 %s55, 1
      %s57 = scalar_select %p54, %s55, %s56
      %p60 = pneg %p54
      %p61 = scmp.eq.s32.totalorder %s19, 1
      %p62 = por %p60, %p61
      %p63 = scmp.ne.s32.totalorder %s55, %s58
      %p64 = scmp.eq.s32.totalorder %s19, 0
      %p65 = por %p63, %p64
      %p66 = scmp.ne.s32.totalorder %s55, %s58
      %p67 = scmp.eq.s32.totalorder %s24, 1
      %p68 = por %p66, %p67
      %p69 = scmp.ne.s32.totalorder %s58, %s59
      %p70 = scmp.eq.s32.totalorder %s24, 0
      %p71 = por %p69, %p70
      %p72 = scmp.ne.s32.totalorder %s58, %s59
      %p73 = scmp.eq.s32.totalorder %s25, 1
      %p74 = por %p72, %p73
      %p76 = scmp.ne.s32.totalorder %s59, %s75
      %p77 = scmp.eq.s32.totalorder %s25, 0
      %p78 = por %p76, %p77
      %s80 = sadd.s32 %s79, 1
      %p83 = scmp.eq.s32.totalorder %s19, 1
      %p84 = scmp.ne.s32.totalorder %s79, %s81
      %p85 = scmp.eq.s32.totalorder %s19, 0
      %p86 = por %p84, %p85
      %p87 = scmp.ne.s32.totalorder %s79, %s81
      %p88 = scmp.eq.s32.totalorder %s24, 1
      %p89 = por %p87, %p88
      %p90 = scmp.ne.s32.totalorder %s81, %s82
      %p91 = scmp.eq.s32.totalorder %s24, 0
      %p92 = por %p90, %p91
      %p93 = scmp.ne.s32.totalorder %s81, %s82
      %p94 = scmp.eq.s32.totalorder %s25, 1
      %p95 = por %p93, %p94
      %p97 = scmp.ne.s32.totalorder %s82, %s96
      %p98 = scmp.eq.s32.totalorder %s25, 0
      %p99 = por %p97, %p98
      %s101 = sadd.s32 %s100, 1
      %p104 = scmp.eq.s32.totalorder %s19, 1
      %p105 = scmp.ne.s32.totalorder %s100, %s102
      %p106 = scmp.eq.s32.totalorder %s19, 0
      %p107 = por %p105, %p106
      %p108 = scmp.ne.s32.totalorder %s100, %s102
      %p109 = scmp.eq.s32.totalorder %s24, 1
      %p110 = por %p108, %p109
      %p111 = scmp.ne.s32.totalorder %s102, %s103
      %p112 = scmp.eq.s32.totalorder %s24, 0
      %p113 = por %p111, %p112
      %p114 = scmp.ne.s32.totalorder %s102, %s103
      %p115 = scmp.eq.s32.totalorder %s25, 1
      %p116 = por %p114, %p115
      %p118 = scmp.ne.s32.totalorder %s103, %s117
      %p119 = scmp.eq.s32.totalorder %s25, 0
      %p120 = por %p118, %p119
      %s122 = sadd.s32 %s121, 1
      %p125 = scmp.eq.s32.totalorder %s19, 1
      %p126 = scmp.ne.s32.totalorder %s121, %s123
      %p127 = scmp.eq.s32.totalorder %s19, 0
      %p128 = por %p126, %p127
      %p129 = scmp.ne.s32.totalorder %s121, %s123
      %p130 = scmp.eq.s32.totalorder %s24, 1
      %p131 = por %p129, %p130
      %p132 = scmp.ne.s32.totalorder %s123, %s124
      %p133 = scmp.eq.s32.totalorder %s24, 0
      %p134 = por %p132, %p133
      %p135 = scmp.ne.s32.totalorder %s123, %s124
      %p136 = scmp.eq.s32.totalorder %s25, 1
      %p137 = por %p135, %p136
      %p139 = scmp.ne.s32.totalorder %s124, %s138
      %p140 = scmp.eq.s32.totalorder %s25, 0
      %p141 = por %p139, %p140
      %s143 = sadd.s32 %s142, 1
      %p146 = scmp.eq.s32.totalorder %s19, 1
      %p147 = scmp.ne.s32.totalorder %s142, %s144
      %p148 = scmp.eq.s32.totalorder %s19, 0
      %p149 = por %p147, %p148
      %p150 = scmp.ne.s32.totalorder %s142, %s144
      %p151 = scmp.eq.s32.totalorder %s24, 1
      %p152 = por %p150, %p151
      %p153 = scmp.ne.s32.totalorder %s144, %s145
      %p154 = scmp.eq.s32.totalorder %s24, 0
      %p155 = por %p153, %p154
      %p156 = scmp.ne.s32.totalorder %s144, %s145
      %p157 = scmp.eq.s32.totalorder %s25, 1
      %p158 = por %p156, %p157
      %p160 = scmp.ne.s32.totalorder %s145, %s159
      %p161 = scmp.eq.s32.totalorder %s25, 0
      %p162 = por %p160, %p161
      %s164 = sadd.s32 %s163, 1
      %p167 = scmp.eq.s32.totalorder %s19, 1
      %p168 = scmp.ne.s32.totalorder %s163, %s165
      %p169 = scmp.eq.s32.totalorder %s19, 0
      %p170 = por %p168, %p169
      %p171 = scmp.ne.s32.totalorder %s163, %s165
      %p172 = scmp.eq.s32.totalorder %s24, 1
      %p173 = por %p171, %p172
      %p174 = scmp.ne.s32.totalorder %s165, %s166
      %p175 = scmp.eq.s32.totalorder %s24, 0
      %p176 = por %p174, %p175
      %p177 = scmp.ne.s32.totalorder %s165, %s166
      %p178 = scmp.eq.s32.totalorder %s25, 1
      %p179 = por %p177, %p178
      %p181 = scmp.ne.s32.totalorder %s166, %s180
      %p182 = scmp.eq.s32.totalorder %s25, 0
      %p183 = por %p181, %p182
      %s185 = sadd.s32 %s184, 1
      %p188 = scmp.eq.s32.totalorder %s19, 1
      %p189 = scmp.ne.s32.totalorder %s184, %s186
      %p190 = scmp.eq.s32.totalorder %s19, 0
      %p191 = por %p189, %p190
      %p192 = scmp.ne.s32.totalorder %s184, %s186
      %p193 = scmp.eq.s32.totalorder %s24, 1
      %p194 = por %p192, %p193
      %p195 = scmp.ne.s32.totalorder %s186, %s187
      %p196 = scmp.eq.s32.totalorder %s24, 0
      %p197 = por %p195, %p196
      %p198 = scmp.ne.s32.totalorder %s186, %s187
      %p199 = scmp.eq.s32.totalorder %s25, 1
      %p200 = por %p198, %p199
      %p202 = scmp.ne.s32.totalorder %s187, %s201
      %p203 = scmp.eq.s32.totalorder %s25, 0
      %p204 = por %p202, %p203
      %s206 = sadd.s32 %s205, 1
      %p209 = scmp.eq.s32.totalorder %s19, 1
      %p210 = scmp.ne.s32.totalorder %s205, %s207
      %p211 = scmp.eq.s32.totalorder %s19, 0
      %p212 = por %p210, %p211
      %p213 = scmp.ne.s32.totalorder %s205, %s207
      %p214 = scmp.eq.s32.totalorder %s24, 1
      %p215 = por %p213, %p214
      %p216 = scmp.ne.s32.totalorder %s207, %s208
      %p217 = scmp.eq.s32.totalorder %s24, 0
      %p218 = por %p216, %p217
      %p219 = scmp.ne.s32.totalorder %s207, %s208
      %p220 = scmp.eq.s32.totalorder %s25, 1
      %p221 = por %p219, %p220
      %p223 = scmp.ne.s32.totalorder %s208, %s222
      %p224 = scmp.eq.s32.totalorder %s25, 0
      %p225 = por %p223, %p224
      %s226 = ssub.s32 %s19, %s26
      %p227 = scmp.eq.s32.totalorder %s226, 0
      %s229 = sadd.s32 %s228, 1
      %s230 = scalar_select %p227, %s228, %s229
      %p233 = pneg %p227
      %p234 = scmp.eq.s32.totalorder %s19, 1
      %p235 = por %p233, %p234
      %p236 = scmp.ne.s32.totalorder %s228, %s231
      %p237 = scmp.eq.s32.totalorder %s19, 0
      %p238 = por %p236, %p237
      %p239 = scmp.ne.s32.totalorder %s228, %s231
      %p240 = scmp.eq.s32.totalorder %s24, 1
      %p241 = por %p239, %p240
      %p242 = scmp.ne.s32.totalorder %s231, %s232
      %p243 = scmp.eq.s32.totalorder %s24, 0
      %p244 = por %p242, %p243
      %p245 = scmp.ne.s32.totalorder %s231, %s232
      %p246 = scmp.eq.s32.totalorder %s25, 1
      %p247 = por %p245, %p246
      %p249 = scmp.ne.s32.totalorder %s232, %s248
      %p250 = scmp.eq.s32.totalorder %s25, 0
      %p251 = por %p249, %p250
      %p252 = scmp.le.s32.totalorder 1, %s19
      %p253 = scmp.lt.s32.totalorder %s19, 3
      %p254 = pnand %p252, %p253
      %p255 = pneg %p254
      // Predicated region
      $region9: #{tpu_custom_call.1} parent=5 // pred_check
        _
      $region10: #{tpu_custom_call.1} parent=5 // pred_check_branch
        %257 = sbr.rel (%p254) target = $region12
      $region11: #{tpu_custom_call.1} parent=5 // pred_region
        %s258 = ssub.s32 %s19, 1
        // Predicated region
        $region13: #{tpu_custom_call.1} parent=11 // pred_check
          %p259 = pneg %p92
        $region14: #{tpu_custom_call.1} parent=11 // pred_check_branch
          %261 = sbr.rel (%p259) target = $region16
        $region15: #{tpu_custom_call.1} parent=11 // pred_region
          _
        $region16: #{tpu_custom_call.1} parent=11 // pred_fallthru
          _
        // Predicated region
        $region17: #{tpu_custom_call.1} parent=11 // pred_check
          %p262 = pneg %p113
        $region18: #{tpu_custom_call.1} parent=11 // pred_check_branch
          %264 = sbr.rel (%p262) target = $region20
        $region19: #{tpu_custom_call.1} parent=11 // pred_region
          %266 = vsyncadd [#allocation4], 0
          %s268 = sshll.u32 %s3, 4
          %s269 = int_to_ptr.hbm [resolvable:$true] %s268
          %s270 = sshll.u32 [#allocation3], 4
          %s271 = int_to_ptr.vmem [resolvable:$true] %s270
          %273 = dma.hbm_to_vmem [thread:$0]  %s269, 32, %s271, [#allocation4]
        $region20: #{tpu_custom_call.1} parent=11 // pred_fallthru
          _
        // Predicated region
        $region21: #{tpu_custom_call.1} parent=11 // pred_check
          %p274 = pneg %p134
        $region22: #{tpu_custom_call.1} parent=11 // pred_check_branch
          %276 = sbr.rel (%p274) target = $region24
        $region23: #{tpu_custom_call.1} parent=11 // pred_region
          _
        $region24: #{tpu_custom_call.1} parent=11 // pred_fallthru
          _
        // Predicated region
        $region25: #{tpu_custom_call.1} parent=11 // pred_check
          %p277 = pneg %p155
        $region26: #{tpu_custom_call.1} parent=11 // pred_check_branch
          %279 = sbr.rel (%p277) target = $region28
        $region27: #{tpu_custom_call.1} parent=11 // pred_region
          _
        $region28: #{tpu_custom_call.1} parent=11 // pred_fallthru
          _
        // Predicated region
        $region29: #{tpu_custom_call.1} parent=11 // pred_check
          %p280 = pneg %p176
        $region30: #{tpu_custom_call.1} parent=11 // pred_check_branch
          %282 = sbr.rel (%p280) target = $region32
        $region31: #{tpu_custom_call.1} parent=11 // pred_region
          _
        $region32: #{tpu_custom_call.1} parent=11 // pred_fallthru
          _
        // Predicated region
        $region33: #{tpu_custom_call.1} parent=11 // pred_check
          %p283 = pneg %p197
        $region34: #{tpu_custom_call.1} parent=11 // pred_check_branch
          %285 = sbr.rel (%p283) target = $region36
        $region35: #{tpu_custom_call.1} parent=11 // pred_region
          %287 = vsyncadd [#allocation6], 0
          %s289 = sshll.u32 %s7, 4
          %s290 = int_to_ptr.hbm [resolvable:$true] %s289
          %s291 = sshll.u32 [#allocation5], 4
          %s292 = int_to_ptr.vmem [resolvable:$true] %s291
          %294 = dma.hbm_to_vmem [thread:$0]  %s290, 32, %s292, [#allocation6]
        $region36: #{tpu_custom_call.1} parent=11 // pred_fallthru
          _
        // Predicated region
        $region37: #{tpu_custom_call.1} parent=11 // pred_check
          %p295 = pneg %p218
        $region38: #{tpu_custom_call.1} parent=11 // pred_check_branch
          %297 = sbr.rel (%p295) target = $region40
        $region39: #{tpu_custom_call.1} parent=11 // pred_region
          _
        $region40: #{tpu_custom_call.1} parent=11 // pred_fallthru
          _
      $region12: #{tpu_custom_call.1} parent=5 // pred_fallthru
        _
      %p298 = scmp.lt.s32.totalorder %s19, 2
      // Predicated region
      $region41: #{tpu_custom_call.1} parent=5 // pred_check
        %p299 = pneg %p298
      $region42: #{tpu_custom_call.1} parent=5 // pred_check_branch
        %301 = sbr.rel (%p299) target = $region44
      $region43: #{tpu_custom_call.1} parent=5 // pred_region
        // Predicated region
        $region45: #{tpu_custom_call.1} parent=43 // pred_check
          %p302 = pneg %p39
        $region46: #{tpu_custom_call.1} parent=43 // pred_check_branch
          %304 = sbr.rel (%p302) target = $region48
        $region47: #{tpu_custom_call.1} parent=43 // pred_region
          %s305 = smul.u32 16, %s19
          %p306 = scmp.lt.s32.totalorder %s305, 31
          %s307 = scalar_select %p306, %s305, 31
          %s308 = smul.addr %s307, 8
          %s309 = scalar_lea.vmem %s0, %s308
          %s310 = smul.u32 16, %s19
        $region48: #{tpu_custom_call.1} parent=43 // pred_fallthru
          _
        // Predicated region
        $region49: #{tpu_custom_call.1} parent=43 // pred_check
          %p311 = pneg %p65
        $region50: #{tpu_custom_call.1} parent=43 // pred_check_branch
          %313 = sbr.rel (%p311) target = $region52
        $region51: #{tpu_custom_call.1} parent=43 // pred_region
          %s314 = smul.u32 16, %s19
          %p315 = scmp.lt.s32.totalorder %s314, 31
          %s316 = scalar_select %p315, %s314, 31
          %s317 = smul.addr %s316, 8
          %s318 = scalar_lea.vmem %s1, %s317
          %s319 = smul.u32 16, %s19
        $region52: #{tpu_custom_call.1} parent=43 // pred_fallthru
          _
      $region44: #{tpu_custom_call.1} parent=5 // pred_fallthru
        _
      %p320 = scmp.le.s32.totalorder 1, %s19
      %p321 = scmp.lt.s32.totalorder %s19, 3
      %p322 = pnand %p320, %p321
      %p323 = pneg %p322
      // Predicated region
      $region53: #{tpu_custom_call.1} parent=5 // pred_check
        _
      $region54: #{tpu_custom_call.1} parent=5 // pred_check_branch
        %325 = sbr.rel (%p322) target = $region56
      $region55: #{tpu_custom_call.1} parent=5 // pred_region
        %s326 = ssub.s32 %s19, 1
        // Predicated region
        $region57: #{tpu_custom_call.1} parent=55 // pred_check
          %p327 = pneg %p113
        $region58: #{tpu_custom_call.1} parent=55 // pred_check_branch
          %329 = sbr.rel (%p327) target = $region60
        $region59: #{tpu_custom_call.1} parent=55 // pred_region
          %331 = dma.done [#allocation4], 32
        $region60: #{tpu_custom_call.1} parent=55 // pred_fallthru
          _
        // Predicated region
        $region61: #{tpu_custom_call.1} parent=55 // pred_check
          %p332 = pneg %p197
        $region62: #{tpu_custom_call.1} parent=55 // pred_check_branch
          %334 = sbr.rel (%p332) target = $region64
        $region63: #{tpu_custom_call.1} parent=55 // pred_region
          %336 = dma.done [#allocation6], 32
        $region64: #{tpu_custom_call.1} parent=55 // pred_fallthru
          _
        %s337 = smul.u32 16, %s24
        %p338 = scmp.lt.s32.totalorder %s337, 31
        %s339 = scalar_select %p338, %s337, 31
        %s340 = smul.addr %s339, 8
        %s341 = scalar_lea.vmem %s0, %s340
        %p342 = pneg %p45
        %p343 = pneg %p42
        %s344 = smul.u32 16, %s24
        %p345 = scmp.lt.s32.totalorder %s344, 31
        %s346 = scalar_select %p345, %s344, 31
        %s347 = smul.addr %s346, 8
        %s348 = scalar_lea.vmem %s1, %s347
        %p349 = pneg %p71
        %p350 = pneg %p68
        %p351 = pneg %p92
        %p352 = pneg %p89
        %p353 = pneg %p113
        %p354 = pneg %p110
        %p355 = pneg %p134
        %p356 = pneg %p131
        %p357 = pneg %p155
        %p358 = pneg %p152
        %p359 = pneg %p176
        %p360 = pneg %p173
        %p361 = pneg %p197
        %p362 = pneg %p194
        %p363 = pneg %p218
        %p364 = pneg %p215
        %p365 = pneg %p244
        %p366 = pneg %p241
        %s367 = smul.u32 16, %s24
        %p368 = scmp.lt.s32.totalorder %s367, 31
        %s369 = scalar_select %p368, %s367, 31
        %s370 = smul.addr %s369, 8
        %s371 = scalar_lea.vmem %s9, %s370
        %s372 = smul.u32 16, %s24
        %p373 = scmp.lt.s32.totalorder %s372, 31
        %s374 = scalar_select %p373, %s372, 31
        %s375 = smul.addr %s374, 8
        %s376 = scalar_lea.vmem %s0, %s375
        %s377 = smul.u32 16, %s24
        %s378 = smul.u32 16, %s24
        %p379 = scmp.lt.s32.totalorder %s378, 31
        %s380 = scalar_select %p379, %s378, 31
        %s381 = smul.addr %s380, 8
        %s382 = scalar_lea.vmem %s1, %s381
        %s383 = smul.u32 16, %s24
        %s384 = smul.u32 16, %s24
        %p385 = scmp.lt.s32.totalorder %s384, 31
        %s386 = scalar_select %p385, %s384, 31
        %s387 = smul.addr %s386, 8
        %s388 = scalar_lea.vmem %s9, %s387
        %s389 = smul.u32 16, %s24
        %v390 = vld [vmem:[%s376] sm:$0xff]
        %v391 = vld [vmem:[%s376 + $0x8] sm:$0xff]
        %v392 = vld [vmem:[%s376 + $0x10] sm:$0xff]
        %v393 = vld [vmem:[%s376 + $0x18] sm:$0xff]
        %v394 = vld [vmem:[%s376 + $0x20] sm:$0xff]
        %v395 = vld [vmem:[%s376 + $0x28] sm:$0xff]
        %v396 = vld [vmem:[%s376 + $0x30] sm:$0xff]
        %v397 = vld [vmem:[%s376 + $0x38] sm:$0xff]
        %v398 = vld [vmem:[%s376 + $0x40] sm:$0xff]
        %v399 = vld [vmem:[%s376 + $0x48] sm:$0xff]
        %v400 = vld [vmem:[%s376 + $0x50] sm:$0xff]
        %v401 = vld [vmem:[%s376 + $0x58] sm:$0xff]
        %v402 = vld [vmem:[%s376 + $0x60] sm:$0xff]
        %v403 = vld [vmem:[%s376 + $0x68] sm:$0xff]
        %v404 = vld [vmem:[%s376 + $0x70] sm:$0xff]
        %v405 = vld [vmem:[%s376 + $0x78] sm:$0xff]
        %v406 = vld [vmem:[%s2] sm:$0x77]
        %v407 = vld [vmem:[#allocation3] sm:$0x3]
        %v409 = vperm.slane %v407, 0
        %v410 = vperm.slane %v407, 1
        %414 = vst [vmem:[#allocation1] ss:$2 sm:$0xff] %v406
        %v415 = vld.sshfl [vmem:[#allocation1] sm:$0xff pattern:$0x75316420]
        %v416 = vld.sshfl [vmem:[#allocation1 + $0x8] sm:$0xff pattern:$0x75316420]
        %vm417 = vcmask 23552
        %v419 = vsel %vm417, %v390, 0
        %v422 = vsel %vm417, %v391, 0
        %v425 = vsel %vm417, %v392, 0
        %v428 = vsel %vm417, %v393, 0
        %v431 = vsel %vm417, %v394, 0
        %v434 = vsel %vm417, %v395, 0
        %v437 = vsel %vm417, %v396, 0
        %v440 = vsel %vm417, %v397, 0
        %v443 = vsel %vm417, %v398, 0
        %v446 = vsel %vm417, %v399, 0
        %v449 = vsel %vm417, %v400, 0
        %v452 = vsel %vm417, %v401, 0
        %v455 = vsel %vm417, %v402, 0
        %v458 = vsel %vm417, %v403, 0
        %v461 = vsel %vm417, %v404, 0
        %v464 = vsel %vm417, %v405, 0
        %vm466 = vcmask 1042432
        %v467 = vsel %vm466, %v415, 0
        %v469 = vsel %vm466, %v416, 0
        %471 = vmatpush.msra.mxu0 0.0
        %472 = vmatpush.msra.mxu0 0.0
        %473 = vmatpush.msra.mxu0 0.0
        %474 = vmatpush.msra.mxu0 0.0
        %475 = vmatpush.msra.mxu0 0.0
        %476 = vmatpush.msra.mxu0 0.0
        %477 = vmatpush.msra.mxu0 0.0
        %478 = vmatpush.msra.mxu0 0.0
        %479 = vmatpush.msra.mxu0 0.0
        %480 = vmatpush.msra.mxu0 0.0
        %481 = vmatpush.msra.mxu0 0.0
        %482 = vmatpush.msra.mxu0 0.0
        %483 = vmatpush.msra.mxu0 0.0
        %484 = vmatpush.msra.mxu0 0.0
        %485 = vmatpush.msra.mxu0 0.0
        %486 = vmatpush.msra.mxu0 %v467
        %487 = vmatmul.f32.gmra.mxu0 %v419
        %v488 = vpop.f32.mrf.mxu0
        %v489 = vadd.f32 %v409, %v488
        %490 = vmatmul.f32.gmra.mxu0 %v422
        %v491 = vpop.f32.mrf.mxu0
        %v492 = vadd.f32 %v409, %v491
        %493 = vmatmul.f32.gmra.mxu0 %v425
        %v494 = vpop.f32.mrf.mxu0
        %v495 = vadd.f32 %v409, %v494
        %496 = vmatmul.f32.gmra.mxu0 %v428
        %v497 = vpop.f32.mrf.mxu0
        %v498 = vadd.f32 %v409, %v497
        %499 = vmatmul.f32.gmra.mxu0 %v431
        %v500 = vpop.f32.mrf.mxu0
        %v501 = vadd.f32 %v409, %v500
        %502 = vmatmul.f32.gmra.mxu0 %v434
        %v503 = vpop.f32.mrf.mxu0
        %v504 = vadd.f32 %v409, %v503
        %505 = vmatmul.f32.gmra.mxu0 %v437
        %v506 = vpop.f32.mrf.mxu0
        %v507 = vadd.f32 %v409, %v506
        %508 = vmatmul.f32.gmra.mxu0 %v440
        %v509 = vpop.f32.mrf.mxu0
        %v510 = vadd.f32 %v409, %v509
        %511 = vmatmul.f32.gmra.mxu0 %v443
        %v512 = vpop.f32.mrf.mxu0
        %v513 = vadd.f32 %v409, %v512
        %514 = vmatmul.f32.gmra.mxu0 %v446
        %v515 = vpop.f32.mrf.mxu0
        %v516 = vadd.f32 %v409, %v515
        %517 = vmatmul.f32.gmra.mxu0 %v449
        %v518 = vpop.f32.mrf.mxu0
        %v519 = vadd.f32 %v409, %v518
        %520 = vmatmul.f32.gmra.mxu0 %v452
        %v521 = vpop.f32.mrf.mxu0
        %v522 = vadd.f32 %v409, %v521
        %523 = vmatmul.f32.gmra.mxu0 %v455
        %v524 = vpop.f32.mrf.mxu0
        %v525 = vadd.f32 %v409, %v524
        %526 = vmatmul.f32.gmra.mxu0 %v458
        %v527 = vpop.f32.mrf.mxu0
        %v528 = vadd.f32 %v409, %v527
        %529 = vmatmul.f32.gmra.mxu0 %v461
        %v530 = vpop.f32.mrf.mxu0
        %v531 = vadd.f32 %v409, %v530
        %532 = vmatmul.f32.gmra.mxu0 %v464
        %v533 = vpop.f32.mrf.mxu0
        %v534 = vadd.f32 %v409, %v533
        %535 = vdwg.mxu0
        %536 = vmatpush.msra.mxu0 0.0
        %537 = vmatpush.msra.mxu0 0.0
        %538 = vmatpush.msra.mxu0 0.0
        %539 = vmatpush.msra.mxu0 0.0
        %540 = vmatpush.msra.mxu0 0.0
        %541 = vmatpush.msra.mxu0 0.0
        %542 = vmatpush.msra.mxu0 0.0
        %543 = vmatpush.msra.mxu0 0.0
        %544 = vmatpush.msra.mxu0 0.0
        %545 = vmatpush.msra.mxu0 0.0
        %546 = vmatpush.msra.mxu0 0.0
        %547 = vmatpush.msra.mxu0 0.0
        %548 = vmatpush.msra.mxu0 0.0
        %549 = vmatpush.msra.mxu0 0.0
        %550 = vmatpush.msra.mxu0 0.0
        %551 = vmatpush.msra.mxu0 %v469
        %552 = vmatmul.f32.gmra.mxu0 %v419
        %v553 = vpop.f32.mrf.mxu0
        %v554 = vadd.f32 %v410, %v553
        %555 = vmatmul.f32.gmra.mxu0 %v422
        %v556 = vpop.f32.mrf.mxu0
        %v557 = vadd.f32 %v410, %v556
        %558 = vmatmul.f32.gmra.mxu0 %v425
        %v559 = vpop.f32.mrf.mxu0
        %v560 = vadd.f32 %v410, %v559
        %561 = vmatmul.f32.gmra.mxu0 %v428
        %v562 = vpop.f32.mrf.mxu0
        %v563 = vadd.f32 %v410, %v562
        %564 = vmatmul.f32.gmra.mxu0 %v431
        %v565 = vpop.f32.mrf.mxu0
        %v566 = vadd.f32 %v410, %v565
        %567 = vmatmul.f32.gmra.mxu0 %v434
        %v568 = vpop.f32.mrf.mxu0
        %v569 = vadd.f32 %v410, %v568
        %570 = vmatmul.f32.gmra.mxu0 %v437
        %v571 = vpop.f32.mrf.mxu0
        %v572 = vadd.f32 %v410, %v571
        %573 = vmatmul.f32.gmra.mxu0 %v440
        %v574 = vpop.f32.mrf.mxu0
        %v575 = vadd.f32 %v410, %v574
        %576 = vmatmul.f32.gmra.mxu0 %v443
        %v577 = vpop.f32.mrf.mxu0
        %v578 = vadd.f32 %v410, %v577
        %579 = vmatmul.f32.gmra.mxu0 %v446
        %v580 = vpop.f32.mrf.mxu0
        %v581 = vadd.f32 %v410, %v580
        %582 = vmatmul.f32.gmra.mxu0 %v449
        %v583 = vpop.f32.mrf.mxu0
        %v584 = vadd.f32 %v410, %v583
        %585 = vmatmul.f32.gmra.mxu0 %v452
        %v586 = vpop.f32.mrf.mxu0
        %v587 = vadd.f32 %v410, %v586
        %588 = vmatmul.f32.gmra.mxu0 %v455
        %v589 = vpop.f32.mrf.mxu0
        %v590 = vadd.f32 %v410, %v589
        %591 = vmatmul.f32.gmra.mxu0 %v458
        %v592 = vpop.f32.mrf.mxu0
        %v593 = vadd.f32 %v410, %v592
        %594 = vmatmul.f32.gmra.mxu0 %v461
        %v595 = vpop.f32.mrf.mxu0
        %v596 = vadd.f32 %v410, %v595
        %597 = vmatmul.f32.gmra.mxu0 %v464
        %v598 = vpop.f32.mrf.mxu0
        %v599 = vadd.f32 %v410, %v598
        %600 = vdwg.mxu0
        %v601 = vmax.f32 %v489, 0.0
        %v602 = vmax.f32 %v554, 0.0
        %v603 = vmax.f32 %v492, 0.0
        %v604 = vmax.f32 %v557, 0.0
        %v605 = vmax.f32 %v495, 0.0
        %v606 = vmax.f32 %v560, 0.0
        %v607 = vmax.f32 %v498, 0.0
        %v608 = vmax.f32 %v563, 0.0
        %v609 = vmax.f32 %v501, 0.0
        %v610 = vmax.f32 %v566, 0.0
        %v611 = vmax.f32 %v504, 0.0
        %v612 = vmax.f32 %v569, 0.0
        %v613 = vmax.f32 %v507, 0.0
        %v614 = vmax.f32 %v572, 0.0
        %v615 = vmax.f32 %v510, 0.0
        %v616 = vmax.f32 %v575, 0.0
        %v617 = vmax.f32 %v513, 0.0
        %v618 = vmax.f32 %v578, 0.0
        %v619 = vmax.f32 %v516, 0.0
        %v620 = vmax.f32 %v581, 0.0
        %v621 = vmax.f32 %v519, 0.0
        %v622 = vmax.f32 %v584, 0.0
        %v623 = vmax.f32 %v522, 0.0
        %v624 = vmax.f32 %v587, 0.0
        %v625 = vmax.f32 %v525, 0.0
        %v626 = vmax.f32 %v590, 0.0
        %v627 = vmax.f32 %v528, 0.0
        %v628 = vmax.f32 %v593, 0.0
        %v629 = vmax.f32 %v531, 0.0
        %v630 = vmax.f32 %v596, 0.0
        %v631 = vmax.f32 %v534, 0.0
        %v632 = vmax.f32 %v599, 0.0
        %v633 = vld [vmem:[%s4] sm:$0xff]
        %v634 = vld [vmem:[%s4 + $0x8] sm:$0xff]
        %v635 = vld [vmem:[%s4 + $0x10] sm:$0xff]
        %v636 = vld [vmem:[%s4 + $0x18] sm:$0xff]
        %v637 = vld [vmem:[%s4 + $0x20] sm:$0xff]
        %v638 = vld [vmem:[%s4 + $0x28] sm:$0xff]
        %v639 = vld [vmem:[%s4 + $0x30] sm:$0xff]
        %v640 = vld [vmem:[%s4 + $0x38] sm:$0xff]
        %v641 = vld [vmem:[%s4 + $0x40] sm:$0xff]
        %v642 = vld [vmem:[%s4 + $0x48] sm:$0xff]
        %v643 = vld [vmem:[%s4 + $0x50] sm:$0xff]
        %v644 = vld [vmem:[%s4 + $0x58] sm:$0xff]
        %v645 = vld [vmem:[%s4 + $0x60] sm:$0xff]
        %v646 = vld [vmem:[%s4 + $0x68] sm:$0xff]
        %v647 = vld [vmem:[%s4 + $0x70] sm:$0xff]
        %v648 = vld [vmem:[%s4 + $0x78] sm:$0xff]
        %v649 = vld [vmem:[%s4 + $0x80] sm:$0xff]
        %v650 = vld [vmem:[%s4 + $0x88] sm:$0xff]
        %v651 = vld [vmem:[%s4 + $0x90] sm:$0xff]
        %v652 = vld [vmem:[%s4 + $0x98] sm:$0xff]
        %v653 = vld [vmem:[%s4 + $0xa0] sm:$0xff]
        %v654 = vld [vmem:[%s4 + $0xa8] sm:$0xff]
        %v655 = vld [vmem:[%s4 + $0xb0] sm:$0xff]
        %v656 = vld [vmem:[%s4 + $0xb8] sm:$0xff]
        %v657 = vld [vmem:[%s4 + $0xc0] sm:$0xff]
        %v658 = vld [vmem:[%s4 + $0xc8] sm:$0xff]
        %v659 = vld [vmem:[%s4 + $0xd0] sm:$0xff]
        %v660 = vld [vmem:[%s4 + $0xd8] sm:$0xff]
        %v661 = vld [vmem:[%s4 + $0xe0] sm:$0xff]
        %v662 = vld [vmem:[%s4 + $0xe8] sm:$0xff]
        %v663 = vld [vmem:[%s4 + $0xf0] sm:$0xff]
        %v664 = vld [vmem:[%s4 + $0xf8] sm:$0xff]
        %v665 = vld [vmem:[%s4 + $0x100] sm:$0xff]
        %v666 = vld [vmem:[%s4 + $0x108] sm:$0xff]
        %v667 = vld [vmem:[%s4 + $0x110] sm:$0xff]
        %v668 = vld [vmem:[%s4 + $0x118] sm:$0xff]
        %v669 = vld [vmem:[%s4 + $0x120] sm:$0xff]
        %v670 = vld [vmem:[%s4 + $0x128] sm:$0xff]
        %v671 = vld [vmem:[%s4 + $0x130] sm:$0xff]
        %v672 = vld [vmem:[%s4 + $0x138] sm:$0xff]
        %v673 = vld [vmem:[%s4 + $0x140] sm:$0xff]
        %v674 = vld [vmem:[%s4 + $0x148] sm:$0xff]
        %v675 = vld [vmem:[%s4 + $0x150] sm:$0xff]
        %v676 = vld [vmem:[%s4 + $0x158] sm:$0xff]
        %v677 = vld [vmem:[%s4 + $0x160] sm:$0xff]
        %v678 = vld [vmem:[%s4 + $0x168] sm:$0xff]
        %v679 = vld [vmem:[%s4 + $0x170] sm:$0xff]
        %v680 = vld [vmem:[%s4 + $0x178] sm:$0xff]
        %v681 = vld [vmem:[%s4 + $0x180] sm:$0xff]
        %v682 = vld [vmem:[%s4 + $0x188] sm:$0xff]
        %v683 = vld [vmem:[%s4 + $0x190] sm:$0xff]
        %v684 = vld [vmem:[%s4 + $0x198] sm:$0xff]
        %v685 = vld [vmem:[%s4 + $0x1a0] sm:$0xff]
        %v686 = vld [vmem:[%s4 + $0x1a8] sm:$0xff]
        %v687 = vld [vmem:[%s4 + $0x1b0] sm:$0xff]
        %v688 = vld [vmem:[%s4 + $0x1b8] sm:$0xff]
        %v689 = vld [vmem:[%s4 + $0x1c0] sm:$0xff]
        %v690 = vld [vmem:[%s4 + $0x1c8] sm:$0xff]
        %v691 = vld [vmem:[%s4 + $0x1d0] sm:$0xff]
        %v692 = vld [vmem:[%s4 + $0x1d8] sm:$0xff]
        %v693 = vld [vmem:[%s4 + $0x1e0] sm:$0xff]
        %v694 = vld [vmem:[%s4 + $0x1e8] sm:$0xff]
        %v695 = vld [vmem:[%s4 + $0x1f0] sm:$0xff]
        %v696 = vld [vmem:[%s4 + $0x1f8] sm:$0xff]
        %v697 = vld [vmem:[%s6] sm:$0x3]
        %v698 = vld [vmem:[%s382] sm:$0xff]
        %v699 = vld [vmem:[%s382 + $0x8] sm:$0xff]
        %v700 = vld [vmem:[%s382 + $0x10] sm:$0xff]
        %v701 = vld [vmem:[%s382 + $0x18] sm:$0xff]
        %v702 = vld [vmem:[%s382 + $0x20] sm:$0xff]
        %v703 = vld [vmem:[%s382 + $0x28] sm:$0xff]
        %v704 = vld [vmem:[%s382 + $0x30] sm:$0xff]
        %v705 = vld [vmem:[%s382 + $0x38] sm:$0xff]
        %v706 = vld [vmem:[%s382 + $0x40] sm:$0xff]
        %v707 = vld [vmem:[%s382 + $0x48] sm:$0xff]
        %v708 = vld [vmem:[%s382 + $0x50] sm:$0xff]
        %v709 = vld [vmem:[%s382 + $0x58] sm:$0xff]
        %v710 = vld [vmem:[%s382 + $0x60] sm:$0xff]
        %v711 = vld [vmem:[%s382 + $0x68] sm:$0xff]
        %v712 = vld [vmem:[%s382 + $0x70] sm:$0xff]
        %v713 = vld [vmem:[%s382 + $0x78] sm:$0xff]
        %v714 = vld [vmem:[%s5] sm:$0x3]
        %716 = vset.pattern.permute.xlu0 0
        %717 = vperm.xlu0 %716, %v698
        %v718 = vpop.permute.xlu0 %717
        %721 = vset.pattern.permute.xlu0 0
        %722 = vperm.xlu0 %721, %v699
        %v723 = vpop.permute.xlu0 %722
        %726 = vset.pattern.permute.xlu0 0
        %727 = vperm.xlu0 %726, %v700
        %v728 = vpop.permute.xlu0 %727
        %731 = vset.pattern.permute.xlu0 0
        %732 = vperm.xlu0 %731, %v701
        %v733 = vpop.permute.xlu0 %732
        %736 = vset.pattern.permute.xlu0 0
        %737 = vperm.xlu0 %736, %v702
        %v738 = vpop.permute.xlu0 %737
        %741 = vset.pattern.permute.xlu0 0
        %742 = vperm.xlu0 %741, %v703
        %v743 = vpop.permute.xlu0 %742
        %746 = vset.pattern.permute.xlu0 0
        %747 = vperm.xlu0 %746, %v704
        %v748 = vpop.permute.xlu0 %747
        %751 = vset.pattern.permute.xlu0 0
        %752 = vperm.xlu0 %751, %v705
        %v753 = vpop.permute.xlu0 %752
        %756 = vset.pattern.permute.xlu0 0
        %757 = vperm.xlu0 %756, %v706
        %v758 = vpop.permute.xlu0 %757
        %761 = vset.pattern.permute.xlu0 0
        %762 = vperm.xlu0 %761, %v707
        %v763 = vpop.permute.xlu0 %762
        %766 = vset.pattern.permute.xlu0 0
        %767 = vperm.xlu0 %766, %v708
        %v768 = vpop.permute.xlu0 %767
        %771 = vset.pattern.permute.xlu0 0
        %772 = vperm.xlu0 %771, %v709
        %v773 = vpop.permute.xlu0 %772
        %776 = vset.pattern.permute.xlu0 0
        %777 = vperm.xlu0 %776, %v710
        %v778 = vpop.permute.xlu0 %777
        %781 = vset.pattern.permute.xlu0 0
        %782 = vperm.xlu0 %781, %v711
        %v783 = vpop.permute.xlu0 %782
        %786 = vset.pattern.permute.xlu0 0
        %787 = vperm.xlu0 %786, %v712
        %v788 = vpop.permute.xlu0 %787
        %791 = vset.pattern.permute.xlu0 0
        %792 = vperm.xlu0 %791, %v713
        %v793 = vpop.permute.xlu0 %792
        %v796 = vperm.slane %v714, 0
        %v797 = vperm.slane %v714, 1
        %v800 = vmul.f32 %v718, %v796
        %v801 = vmul.f32 %v718, %v797
        %v802 = vmul.f32 %v723, %v796
        %v803 = vmul.f32 %v723, %v797
        %v804 = vmul.f32 %v728, %v796
        %v805 = vmul.f32 %v728, %v797
        %v806 = vmul.f32 %v733, %v796
        %v807 = vmul.f32 %v733, %v797
        %v808 = vmul.f32 %v738, %v796
        %v809 = vmul.f32 %v738, %v797
        %v810 = vmul.f32 %v743, %v796
        %v811 = vmul.f32 %v743, %v797
        %v812 = vmul.f32 %v748, %v796
        %v813 = vmul.f32 %v748, %v797
        %v814 = vmul.f32 %v753, %v796
        %v815 = vmul.f32 %v753, %v797
        %v816 = vmul.f32 %v758, %v796
        %v817 = vmul.f32 %v758, %v797
        %v818 = vmul.f32 %v763, %v796
        %v819 = vmul.f32 %v763, %v797
        %v820 = vmul.f32 %v768, %v796
        %v821 = vmul.f32 %v768, %v797
        %v822 = vmul.f32 %v773, %v796
        %v823 = vmul.f32 %v773, %v797
        %v824 = vmul.f32 %v778, %v796
        %v825 = vmul.f32 %v778, %v797
        %v826 = vmul.f32 %v783, %v796
        %v827 = vmul.f32 %v783, %v797
        %v828 = vmul.f32 %v788, %v796
        %v829 = vmul.f32 %v788, %v797
        %v830 = vmul.f32 %v793, %v796
        %v831 = vmul.f32 %v793, %v797
        %v833 = vperm.slane %v697, 0
        %v834 = vperm.slane %v697, 1
        %v837 = vadd.f32 %v833, %v800
        %v838 = vadd.f32 %v834, %v801
        %v839 = vadd.f32 %v833, %v802
        %v840 = vadd.f32 %v834, %v803
        %v841 = vadd.f32 %v833, %v804
        %v842 = vadd.f32 %v834, %v805
        %v843 = vadd.f32 %v833, %v806
        %v844 = vadd.f32 %v834, %v807
        %v845 = vadd.f32 %v833, %v808
        %v846 = vadd.f32 %v834, %v809
        %v847 = vadd.f32 %v833, %v810
        %v848 = vadd.f32 %v834, %v811
        %v849 = vadd.f32 %v833, %v812
        %v850 = vadd.f32 %v834, %v813
        %v851 = vadd.f32 %v833, %v814
        %v852 = vadd.f32 %v834, %v815
        %v853 = vadd.f32 %v833, %v816
        %v854 = vadd.f32 %v834, %v817
        %v855 = vadd.f32 %v833, %v818
        %v856 = vadd.f32 %v834, %v819
        %v857 = vadd.f32 %v833, %v820
        %v858 = vadd.f32 %v834, %v821
        %v859 = vadd.f32 %v833, %v822
        %v860 = vadd.f32 %v834, %v823
        %v861 = vadd.f32 %v833, %v824
        %v862 = vadd.f32 %v834, %v825
        %v863 = vadd.f32 %v833, %v826
        %v864 = vadd.f32 %v834, %v827
        %v865 = vadd.f32 %v833, %v828
        %v866 = vadd.f32 %v834, %v829
        %v867 = vadd.f32 %v833, %v830
        %v868 = vadd.f32 %v834, %v831
        %869 = vmatpush.msra.mxu0 %v663
        %870 = vmatpush.msra.mxu0 %v661
        %871 = vmatpush.msra.mxu0 %v659
        %872 = vmatpush.msra.mxu0 %v657
        %873 = vmatpush.msra.mxu0 %v655
        %874 = vmatpush.msra.mxu0 %v653
        %875 = vmatpush.msra.mxu0 %v651
        %876 = vmatpush.msra.mxu0 %v649
        %877 = vmatpush.msra.mxu0 %v647
        %878 = vmatpush.msra.mxu0 %v645
        %879 = vmatpush.msra.mxu0 %v643
        %880 = vmatpush.msra.mxu0 %v641
        %881 = vmatpush.msra.mxu0 %v639
        %882 = vmatpush.msra.mxu0 %v637
        %883 = vmatpush.msra.mxu0 %v635
        %884 = vmatpush.msra.mxu0 %v633
        %885 = vmatmul.f32.gmra.mxu0 %v601
        %v886 = vpop.f32.mrf.mxu0
        %v887 = vadd.f32 %v837, %v886
        %888 = vmatmul.f32.gmra.mxu0 %v603
        %v889 = vpop.f32.mrf.mxu0
        %v890 = vadd.f32 %v839, %v889
        %891 = vmatmul.f32.gmra.mxu0 %v605
        %v892 = vpop.f32.mrf.mxu0
        %v893 = vadd.f32 %v841, %v892
        %894 = vmatmul.f32.gmra.mxu0 %v607
        %v895 = vpop.f32.mrf.mxu0
        %v896 = vadd.f32 %v843, %v895
        %897 = vmatmul.f32.gmra.mxu0 %v609
        %v898 = vpop.f32.mrf.mxu0
        %v899 = vadd.f32 %v845, %v898
        %900 = vmatmul.f32.gmra.mxu0 %v611
        %v901 = vpop.f32.mrf.mxu0
        %v902 = vadd.f32 %v847, %v901
        %903 = vmatmul.f32.gmra.mxu0 %v613
        %v904 = vpop.f32.mrf.mxu0
        %v905 = vadd.f32 %v849, %v904
        %906 = vmatmul.f32.gmra.mxu0 %v615
        %v907 = vpop.f32.mrf.mxu0
        %v908 = vadd.f32 %v851, %v907
        %909 = vmatmul.f32.gmra.mxu0 %v617
        %v910 = vpop.f32.mrf.mxu0
        %v911 = vadd.f32 %v853, %v910
        %912 = vmatmul.f32.gmra.mxu0 %v619
        %v913 = vpop.f32.mrf.mxu0
        %v914 = vadd.f32 %v855, %v913
        %915 = vmatmul.f32.gmra.mxu0 %v621
        %v916 = vpop.f32.mrf.mxu0
        %v917 = vadd.f32 %v857, %v916
        %918 = vmatmul.f32.gmra.mxu0 %v623
        %v919 = vpop.f32.mrf.mxu0
        %v920 = vadd.f32 %v859, %v919
        %921 = vmatmul.f32.gmra.mxu0 %v625
        %v922 = vpop.f32.mrf.mxu0
        %v923 = vadd.f32 %v861, %v922
        %924 = vmatmul.f32.gmra.mxu0 %v627
        %v925 = vpop.f32.mrf.mxu0
        %v926 = vadd.f32 %v863, %v925
        %927 = vmatmul.f32.gmra.mxu0 %v629
        %v928 = vpop.f32.mrf.mxu0
        %v929 = vadd.f32 %v865, %v928
        %930 = vmatmul.f32.gmra.mxu0 %v631
        %v931 = vpop.f32.mrf.mxu0
        %v932 = vadd.f32 %v867, %v931
        %933 = vdwg.mxu0
        %934 = vmatpush.msra.mxu0 %v695
        %935 = vmatpush.msra.mxu0 %v693
        %936 = vmatpush.msra.mxu0 %v691
        %937 = vmatpush.msra.mxu0 %v689
        %938 = vmatpush.msra.mxu0 %v687
        %939 = vmatpush.msra.mxu0 %v685
        %940 = vmatpush.msra.mxu0 %v683
        %941 = vmatpush.msra.mxu0 %v681
        %942 = vmatpush.msra.mxu0 %v679
        %943 = vmatpush.msra.mxu0 %v677
        %944 = vmatpush.msra.mxu0 %v675
        %945 = vmatpush.msra.mxu0 %v673
        %946 = vmatpush.msra.mxu0 %v671
        %947 = vmatpush.msra.mxu0 %v669
        %948 = vmatpush.msra.mxu0 %v667
        %949 = vmatpush.msra.mxu0 %v665
        %950 = vmatmul.f32.gmra.mxu0 %v602
        %v951 = vpop.f32.mrf.mxu0
        %v952 = vadd.f32 %v887, %v951
        %953 = vmatmul.f32.gmra.mxu0 %v604
        %v954 = vpop.f32.mrf.mxu0
        %v955 = vadd.f32 %v890, %v954
        %956 = vmatmul.f32.gmra.mxu0 %v606
        %v957 = vpop.f32.mrf.mxu0
        %v958 = vadd.f32 %v893, %v957
        %959 = vmatmul.f32.gmra.mxu0 %v608
        %v960 = vpop.f32.mrf.mxu0
        %v961 = vadd.f32 %v896, %v960
        %962 = vmatmul.f32.gmra.mxu0 %v610
        %v963 = vpop.f32.mrf.mxu0
        %v964 = vadd.f32 %v899, %v963
        %965 = vmatmul.f32.gmra.mxu0 %v612
        %v966 = vpop.f32.mrf.mxu0
        %v967 = vadd.f32 %v902, %v966
        %968 = vmatmul.f32.gmra.mxu0 %v614
        %v969 = vpop.f32.mrf.mxu0
        %v970 = vadd.f32 %v905, %v969
        %971 = vmatmul.f32.gmra.mxu0 %v616
        %v972 = vpop.f32.mrf.mxu0
        %v973 = vadd.f32 %v908, %v972
        %974 = vmatmul.f32.gmra.mxu0 %v618
        %v975 = vpop.f32.mrf.mxu0
        %v976 = vadd.f32 %v911, %v975
        %977 = vmatmul.f32.gmra.mxu0 %v620
        %v978 = vpop.f32.mrf.mxu0
        %v979 = vadd.f32 %v914, %v978
        %980 = vmatmul.f32.gmra.mxu0 %v622
        %v981 = vpop.f32.mrf.mxu0
        %v982 = vadd.f32 %v917, %v981
        %983 = vmatmul.f32.gmra.mxu0 %v624
        %v984 = vpop.f32.mrf.mxu0
        %v985 = vadd.f32 %v920, %v984
        %986 = vmatmul.f32.gmra.mxu0 %v626
        %v987 = vpop.f32.mrf.mxu0
        %v988 = vadd.f32 %v923, %v987
        %989 = vmatmul.f32.gmra.mxu0 %v628
        %v990 = vpop.f32.mrf.mxu0
        %v991 = vadd.f32 %v926, %v990
        %992 = vmatmul.f32.gmra.mxu0 %v630
        %v993 = vpop.f32.mrf.mxu0
        %v994 = vadd.f32 %v929, %v993
        %995 = vmatmul.f32.gmra.mxu0 %v632
        %v996 = vpop.f32.mrf.mxu0
        %v997 = vadd.f32 %v932, %v996
        %998 = vdwg.mxu0
        %999 = vmatpush.msra.mxu0 %v664
        %1000 = vmatpush.msra.mxu0 %v662
        %1001 = vmatpush.msra.mxu0 %v660
        %1002 = vmatpush.msra.mxu0 %v658
        %1003 = vmatpush.msra.mxu0 %v656
        %1004 = vmatpush.msra.mxu0 %v654
        %1005 = vmatpush.msra.mxu0 %v652
        %1006 = vmatpush.msra.mxu0 %v650
        %1007 = vmatpush.msra.mxu0 %v648
        %1008 = vmatpush.msra.mxu0 %v646
        %1009 = vmatpush.msra.mxu0 %v644
        %1010 = vmatpush.msra.mxu0 %v642
        %1011 = vmatpush.msra.mxu0 %v640
        %1012 = vmatpush.msra.mxu0 %v638
        %1013 = vmatpush.msra.mxu0 %v636
        %1014 = vmatpush.msra.mxu0 %v634
        %1015 = vmatmul.f32.gmra.mxu0 %v601
        %v1016 = vpop.f32.mrf.mxu0
        %v1017 = vadd.f32 %v838, %v1016
        %1018 = vmatmul.f32.gmra.mxu0 %v603
        %v1019 = vpop.f32.mrf.mxu0
        %v1020 = vadd.f32 %v840, %v1019
        %1021 = vmatmul.f32.gmra.mxu0 %v605
        %v1022 = vpop.f32.mrf.mxu0
        %v1023 = vadd.f32 %v842, %v1022
        %1024 = vmatmul.f32.gmra.mxu0 %v607
        %v1025 = vpop.f32.mrf.mxu0
        %v1026 = vadd.f32 %v844, %v1025
        %1027 = vmatmul.f32.gmra.mxu0 %v609
        %v1028 = vpop.f32.mrf.mxu0
        %v1029 = vadd.f32 %v846, %v1028
        %1030 = vmatmul.f32.gmra.mxu0 %v611
        %v1031 = vpop.f32.mrf.mxu0
        %v1032 = vadd.f32 %v848, %v1031
        %1033 = vmatmul.f32.gmra.mxu0 %v613
        %v1034 = vpop.f32.mrf.mxu0
        %v1035 = vadd.f32 %v850, %v1034
        %1036 = vmatmul.f32.gmra.mxu0 %v615
        %v1037 = vpop.f32.mrf.mxu0
        %v1038 = vadd.f32 %v852, %v1037
        %1039 = vmatmul.f32.gmra.mxu0 %v617
        %v1040 = vpop.f32.mrf.mxu0
        %v1041 = vadd.f32 %v854, %v1040
        %1042 = vmatmul.f32.gmra.mxu0 %v619
        %v1043 = vpop.f32.mrf.mxu0
        %v1044 = vadd.f32 %v856, %v1043
        %1045 = vmatmul.f32.gmra.mxu0 %v621
        %v1046 = vpop.f32.mrf.mxu0
        %v1047 = vadd.f32 %v858, %v1046
        %1048 = vmatmul.f32.gmra.mxu0 %v623
        %v1049 = vpop.f32.mrf.mxu0
        %v1050 = vadd.f32 %v860, %v1049
        %1051 = vmatmul.f32.gmra.mxu0 %v625
        %v1052 = vpop.f32.mrf.mxu0
        %v1053 = vadd.f32 %v862, %v1052
        %1054 = vmatmul.f32.gmra.mxu0 %v627
        %v1055 = vpop.f32.mrf.mxu0
        %v1056 = vadd.f32 %v864, %v1055
        %1057 = vmatmul.f32.gmra.mxu0 %v629
        %v1058 = vpop.f32.mrf.mxu0
        %v1059 = vadd.f32 %v866, %v1058
        %1060 = vmatmul.f32.gmra.mxu0 %v631
        %v1061 = vpop.f32.mrf.mxu0
        %v1062 = vadd.f32 %v868, %v1061
        %1063 = vdwg.mxu0
        %1064 = vmatpush.msra.mxu0 %v696
        %1065 = vmatpush.msra.mxu0 %v694
        %1066 = vmatpush.msra.mxu0 %v692
        %1067 = vmatpush.msra.mxu0 %v690
        %1068 = vmatpush.msra.mxu0 %v688
        %1069 = vmatpush.msra.mxu0 %v686
        %1070 = vmatpush.msra.mxu0 %v684
        %1071 = vmatpush.msra.mxu0 %v682
        %1072 = vmatpush.msra.mxu0 %v680
        %1073 = vmatpush.msra.mxu0 %v678
        %1074 = vmatpush.msra.mxu0 %v676
        %1075 = vmatpush.msra.mxu0 %v674
        %1076 = vmatpush.msra.mxu0 %v672
        %1077 = vmatpush.msra.mxu0 %v670
        %1078 = vmatpush.msra.mxu0 %v668
        %1079 = vmatpush.msra.mxu0 %v666
        %1080 = vmatmul.f32.gmra.mxu0 %v602
        %v1081 = vpop.f32.mrf.mxu0
        %v1082 = vadd.f32 %v1017, %v1081
        %1083 = vmatmul.f32.gmra.mxu0 %v604
        %v1084 = vpop.f32.mrf.mxu0
        %v1085 = vadd.f32 %v1020, %v1084
        %1086 = vmatmul.f32.gmra.mxu0 %v606
        %v1087 = vpop.f32.mrf.mxu0
        %v1088 = vadd.f32 %v1023, %v1087
        %1089 = vmatmul.f32.gmra.mxu0 %v608
        %v1090 = vpop.f32.mrf.mxu0
        %v1091 = vadd.f32 %v1026, %v1090
        %1092 = vmatmul.f32.gmra.mxu0 %v610
        %v1093 = vpop.f32.mrf.mxu0
        %v1094 = vadd.f32 %v1029, %v1093
        %1095 = vmatmul.f32.gmra.mxu0 %v612
        %v1096 = vpop.f32.mrf.mxu0
        %v1097 = vadd.f32 %v1032, %v1096
        %1098 = vmatmul.f32.gmra.mxu0 %v614
        %v1099 = vpop.f32.mrf.mxu0
        %v1100 = vadd.f32 %v1035, %v1099
        %1101 = vmatmul.f32.gmra.mxu0 %v616
        %v1102 = vpop.f32.mrf.mxu0
        %v1103 = vadd.f32 %v1038, %v1102
        %1104 = vmatmul.f32.gmra.mxu0 %v618
        %v1105 = vpop.f32.mrf.mxu0
        %v1106 = vadd.f32 %v1041, %v1105
        %1107 = vmatmul.f32.gmra.mxu0 %v620
        %v1108 = vpop.f32.mrf.mxu0
        %v1109 = vadd.f32 %v1044, %v1108
        %1110 = vmatmul.f32.gmra.mxu0 %v622
        %v1111 = vpop.f32.mrf.mxu0
        %v1112 = vadd.f32 %v1047, %v1111
        %1113 = vmatmul.f32.gmra.mxu0 %v624
        %v1114 = vpop.f32.mrf.mxu0
        %v1115 = vadd.f32 %v1050, %v1114
        %1116 = vmatmul.f32.gmra.mxu0 %v626
        %v1117 = vpop.f32.mrf.mxu0
        %v1118 = vadd.f32 %v1053, %v1117
        %1119 = vmatmul.f32.gmra.mxu0 %v628
        %v1120 = vpop.f32.mrf.mxu0
        %v1121 = vadd.f32 %v1056, %v1120
        %1122 = vmatmul.f32.gmra.mxu0 %v630
        %v1123 = vpop.f32.mrf.mxu0
        %v1124 = vadd.f32 %v1059, %v1123
        %1125 = vmatmul.f32.gmra.mxu0 %v632
        %v1126 = vpop.f32.mrf.mxu0
        %v1127 = vadd.f32 %v1062, %v1126
        %1128 = vdwg.mxu0
        %v1129 = vmax.f32 %v952, 0.0
        %v1130 = vmax.f32 %v1082, 0.0
        %v1131 = vmax.f32 %v955, 0.0
        %v1132 = vmax.f32 %v1085, 0.0
        %v1133 = vmax.f32 %v958, 0.0
        %v1134 = vmax.f32 %v1088, 0.0
        %v1135 = vmax.f32 %v961, 0.0
        %v1136 = vmax.f32 %v1091, 0.0
        %v1137 = vmax.f32 %v964, 0.0
        %v1138 = vmax.f32 %v1094, 0.0
        %v1139 = vmax.f32 %v967, 0.0
        %v1140 = vmax.f32 %v1097, 0.0
        %v1141 = vmax.f32 %v970, 0.0
        %v1142 = vmax.f32 %v1100, 0.0
        %v1143 = vmax.f32 %v973, 0.0
        %v1144 = vmax.f32 %v1103, 0.0
        %v1145 = vmax.f32 %v976, 0.0
        %v1146 = vmax.f32 %v1106, 0.0
        %v1147 = vmax.f32 %v979, 0.0
        %v1148 = vmax.f32 %v1109, 0.0
        %v1149 = vmax.f32 %v982, 0.0
        %v1150 = vmax.f32 %v1112, 0.0
        %v1151 = vmax.f32 %v985, 0.0
        %v1152 = vmax.f32 %v1115, 0.0
        %v1153 = vmax.f32 %v988, 0.0
        %v1154 = vmax.f32 %v1118, 0.0
        %v1155 = vmax.f32 %v991, 0.0
        %v1156 = vmax.f32 %v1121, 0.0
        %v1157 = vmax.f32 %v994, 0.0
        %v1158 = vmax.f32 %v1124, 0.0
        %v1159 = vmax.f32 %v997, 0.0
        %v1160 = vmax.f32 %v1127, 0.0
        %v1161 = vld [vmem:[#allocation5] sm:$0x3]
        %v1163 = vperm.slane %v1161, 0
        %v1164 = vperm.slane %v1161, 1
        %v1167 = vmul.f32 %v1129, %v1163
        %v1168 = vmul.f32 %v1130, %v1164
        %v1169 = vmul.f32 %v1131, %v1163
        %v1170 = vmul.f32 %v1132, %v1164
        %v1171 = vmul.f32 %v1133, %v1163
        %v1172 = vmul.f32 %v1134, %v1164
        %v1173 = vmul.f32 %v1135, %v1163
        %v1174 = vmul.f32 %v1136, %v1164
        %v1175 = vmul.f32 %v1137, %v1163
        %v1176 = vmul.f32 %v1138, %v1164
        %v1177 = vmul.f32 %v1139, %v1163
        %v1178 = vmul.f32 %v1140, %v1164
        %v1179 = vmul.f32 %v1141, %v1163
        %v1180 = vmul.f32 %v1142, %v1164
        %v1181 = vmul.f32 %v1143, %v1163
        %v1182 = vmul.f32 %v1144, %v1164
        %v1183 = vmul.f32 %v1145, %v1163
        %v1184 = vmul.f32 %v1146, %v1164
        %v1185 = vmul.f32 %v1147, %v1163
        %v1186 = vmul.f32 %v1148, %v1164
        %v1187 = vmul.f32 %v1149, %v1163
        %v1188 = vmul.f32 %v1150, %v1164
        %v1189 = vmul.f32 %v1151, %v1163
        %v1190 = vmul.f32 %v1152, %v1164
        %v1191 = vmul.f32 %v1153, %v1163
        %v1192 = vmul.f32 %v1154, %v1164
        %v1193 = vmul.f32 %v1155, %v1163
        %v1194 = vmul.f32 %v1156, %v1164
        %v1195 = vmul.f32 %v1157, %v1163
        %v1196 = vmul.f32 %v1158, %v1164
        %v1197 = vmul.f32 %v1159, %v1163
        %v1198 = vmul.f32 %v1160, %v1164
        %v1199 = vadd.f32 %v1167, %v1168
        %1200 = vadd.xlane.f32.xlu0 %v1199
        %v1201 = vpop.xlane.xlu0 %1200
        %v1202 = vadd.f32 %v1169, %v1170
        %1203 = vadd.xlane.f32.xlu0 %v1202
        %v1204 = vpop.xlane.xlu0 %1203
        %v1205 = vadd.f32 %v1171, %v1172
        %1206 = vadd.xlane.f32.xlu0 %v1205
        %v1207 = vpop.xlane.xlu0 %1206
        %v1208 = vadd.f32 %v1173, %v1174
        %1209 = vadd.xlane.f32.xlu0 %v1208
        %v1210 = vpop.xlane.xlu0 %1209
        %v1211 = vadd.f32 %v1175, %v1176
        %1212 = vadd.xlane.f32.xlu0 %v1211
        %v1213 = vpop.xlane.xlu0 %1212
        %v1214 = vadd.f32 %v1177, %v1178
        %1215 = vadd.xlane.f32.xlu0 %v1214
        %v1216 = vpop.xlane.xlu0 %1215
        %v1217 = vadd.f32 %v1179, %v1180
        %1218 = vadd.xlane.f32.xlu0 %v1217
        %v1219 = vpop.xlane.xlu0 %1218
        %v1220 = vadd.f32 %v1181, %v1182
        %1221 = vadd.xlane.f32.xlu0 %v1220
        %v1222 = vpop.xlane.xlu0 %1221
        %v1223 = vadd.f32 %v1183, %v1184
        %1224 = vadd.xlane.f32.xlu0 %v1223
        %v1225 = vpop.xlane.xlu0 %1224
        %v1226 = vadd.f32 %v1185, %v1186
        %1227 = vadd.xlane.f32.xlu0 %v1226
        %v1228 = vpop.xlane.xlu0 %1227
        %v1229 = vadd.f32 %v1187, %v1188
        %1230 = vadd.xlane.f32.xlu0 %v1229
        %v1231 = vpop.xlane.xlu0 %1230
        %v1232 = vadd.f32 %v1189, %v1190
        %1233 = vadd.xlane.f32.xlu0 %v1232
        %v1234 = vpop.xlane.xlu0 %1233
        %v1235 = vadd.f32 %v1191, %v1192
        %1236 = vadd.xlane.f32.xlu0 %v1235
        %v1237 = vpop.xlane.xlu0 %1236
        %v1238 = vadd.f32 %v1193, %v1194
        %1239 = vadd.xlane.f32.xlu0 %v1238
        %v1240 = vpop.xlane.xlu0 %1239
        %v1241 = vadd.f32 %v1195, %v1196
        %1242 = vadd.xlane.f32.xlu0 %v1241
        %v1243 = vpop.xlane.xlu0 %1242
        %v1244 = vadd.f32 %v1197, %v1198
        %1245 = vadd.xlane.f32.xlu0 %v1244
        %v1246 = vpop.xlane.xlu0 %1245
        %v1247 = vld [vmem:[#allocation2] sm:$0x1]
        %v1249 = vperm.slane %v1247, 0
        %v1251 = vadd.f32 %v1201, %v1249
        %v1252 = vadd.f32 %v1204, %v1249
        %v1253 = vadd.f32 %v1207, %v1249
        %v1254 = vadd.f32 %v1210, %v1249
        %v1255 = vadd.f32 %v1213, %v1249
        %v1256 = vadd.f32 %v1216, %v1249
        %v1257 = vadd.f32 %v1219, %v1249
        %v1258 = vadd.f32 %v1222, %v1249
        %v1259 = vadd.f32 %v1225, %v1249
        %v1260 = vadd.f32 %v1228, %v1249
        %v1261 = vadd.f32 %v1231, %v1249
        %v1262 = vadd.f32 %v1234, %v1249
        %v1263 = vadd.f32 %v1237, %v1249
        %v1264 = vadd.f32 %v1240, %v1249
        %v1265 = vadd.f32 %v1243, %v1249
        %v1266 = vadd.f32 %v1246, %v1249
        %vm1267 = vcmask 7168
        %1268 = vst.msk [vmem:[%s388] sm:$0xff] %vm1267, %v1251
        %1269 = vst.msk [vmem:[%s388 + $0x8] sm:$0xff] %vm1267, %v1252
        %1270 = vst.msk [vmem:[%s388 + $0x10] sm:$0xff] %vm1267, %v1253
        %1271 = vst.msk [vmem:[%s388 + $0x18] sm:$0xff] %vm1267, %v1254
        %1272 = vst.msk [vmem:[%s388 + $0x20] sm:$0xff] %vm1267, %v1255
        %1273 = vst.msk [vmem:[%s388 + $0x28] sm:$0xff] %vm1267, %v1256
        %1274 = vst.msk [vmem:[%s388 + $0x30] sm:$0xff] %vm1267, %v1257
        %1275 = vst.msk [vmem:[%s388 + $0x38] sm:$0xff] %vm1267, %v1258
        %1276 = vst.msk [vmem:[%s388 + $0x40] sm:$0xff] %vm1267, %v1259
        %1277 = vst.msk [vmem:[%s388 + $0x48] sm:$0xff] %vm1267, %v1260
        %1278 = vst.msk [vmem:[%s388 + $0x50] sm:$0xff] %vm1267, %v1261
        %1279 = vst.msk [vmem:[%s388 + $0x58] sm:$0xff] %vm1267, %v1262
        %1280 = vst.msk [vmem:[%s388 + $0x60] sm:$0xff] %vm1267, %v1263
        %1281 = vst.msk [vmem:[%s388 + $0x68] sm:$0xff] %vm1267, %v1264
        %1282 = vst.msk [vmem:[%s388 + $0x70] sm:$0xff] %vm1267, %v1265
        %1283 = vst.msk [vmem:[%s388 + $0x78] sm:$0xff] %vm1267, %v1266
        %s1284 = smul.u32 16, %s24
        %p1285 = scmp.lt.s32.totalorder %s1284, 31
        %s1286 = scalar_select %p1285, %s1284, 31
        %s1287 = smul.addr %s1286, 8
        %s1288 = scalar_lea.vmem %s9, %s1287
        // Predicated region
        $region65: #{tpu_custom_call.1} parent=55 // pred_check
          %p1289 = pneg %p241
        $region66: #{tpu_custom_call.1} parent=55 // pred_check_branch
          %1291 = sbr.rel (%p1289) target = $region68
        $region67: #{tpu_custom_call.1} parent=55 // pred_region
          %s1292 = smul.u32 16, %s24
        $region68: #{tpu_custom_call.1} parent=55 // pred_fallthru
          _
      $region56: #{tpu_custom_call.1} parent=5 // pred_fallthru
        _
      %p1293 = scmp.le.s32.totalorder 2, %s19
      // Predicated region
      $region69: #{tpu_custom_call.1} parent=5 // pred_check
        %p1294 = pneg %p1293
      $region70: #{tpu_custom_call.1} parent=5 // pred_check_branch
        %1296 = sbr.rel (%p1294) target = $region72
      $region71: #{tpu_custom_call.1} parent=5 // pred_region
        %s1297 = ssub.s32 %s19, 2
        // Predicated region
        $region73: #{tpu_custom_call.1} parent=71 // pred_check
          %p1298 = pneg %p247
        $region74: #{tpu_custom_call.1} parent=71 // pred_check_branch
          %1300 = sbr.rel (%p1298) target = $region76
        $region75: #{tpu_custom_call.1} parent=71 // pred_region
          %s1301 = smul.u32 16, %s25
          %p1302 = scmp.lt.s32.totalorder %s1301, 31
          %s1303 = scalar_select %p1302, %s1301, 31
          %s1304 = smul.addr %s1303, 8
          %s1305 = scalar_lea.vmem %s9, %s1304
        $region76: #{tpu_custom_call.1} parent=71 // pred_fallthru
          _
      $region72: #{tpu_custom_call.1} parent=5 // pred_fallthru
        _
    $region6: #{tpu_custom_call.1} parent=1 // loop_footer
      %s23 = sadd.s32 1, %s19
    $region7: #{tpu_custom_call.1} parent=1 // loop_footer_branch
      %18 = sbr.rel target = $region3
    $region8: #{tpu_custom_call.1} parent=1 // loop_exit
      _
    %1306 = vsyncpa [#allocation4], 1
    %s1307 = scalar_lea.sflag [#allocation4], 1
    %1308 = vsyncpa %s1307, 1
    %1309 = vsyncpa [#allocation6], 1

</llo_original>
